<compile_context>
chip_gen: v7x
topology: tpu7x:2x2x1
jax: 0.10.0
libtpu: 0.0.40
codegen_flags: <defaults>
</compile_context>

<pallas_src>
import functools

import jax
import jax.numpy as jnp
import numpy as np
from jax.experimental import pallas as pl
from jax.experimental.pallas import tpu as pltpu


# ============================================================================
# Kernel 1: fused (folded-norm 3x3 conv + ReLU) + both 1x1-conv heads.
#   x_ref   : (C, Lflat)       bf16  flattened pixel_mean-padded image (chan-major)
#   wc_ref  : (Cf, 9*C)        bf16  folded conv weights, one contraction
#   bc_ref  : (Cf, 1)          f32   folded conv bias
#   wh_ref  : (n_out_pad, Cf)  f32   concatenated sem + instance 1x1 heads
#   bh_ref  : (n_out_pad, 1)   f32
#   o_ref   : (n_out_pad, acc_pad) f32  channel-major, pixels lane-dense
#   patch_ref: VMEM scratch (9*C, acc_pad) f32
# ============================================================================
def _fused_conv_heads_kernel(x_ref, wc_ref, bc_ref, wh_ref, bh_ref, o_ref,
                             patch_ref, *, wp, acc_pad, c_in):
    # Assemble the (9*C, acc_pad) patch block once: dy/dx taps are STATIC
    # lane-offset windows of the flattened padded image.
    for dy in range(3):
        for dx in range(3):
            t = 3 * dy + dx
            off = dy * wp + dx                                    # static int
            piece = x_ref[:, pl.ds(off, acc_pad)]                 # (C, acc_pad) bf16
            patch_ref[t * c_in:(t + 1) * c_in, :] = piece.astype(jnp.float32)

    patches = patch_ref[...].astype(jnp.bfloat16)                 # (9C, acc_pad)
    # ONE MXU matmul for the whole 3x3 conv; result is already channel-major.
    feat = jnp.dot(wc_ref[...], patches,
                   preferred_element_type=jnp.float32)            # (Cf, acc_pad)
    feat = jnp.maximum(feat + bc_ref[...], 0.0)                   # bias + ReLU (f32)
    # Fused 1x1 heads: semantic classes + instance mask logits in one matmul.
    o_ref[...] = jnp.dot(wh_ref[...], feat,
                         preferred_element_type=jnp.float32) + bh_ref[...]


def fused_backbone_and_heads(xflat, wcr, bc, wh_t, bh, *, wp, acc_pad):
    B, C, Lflat = xflat.shape
    Cf = wcr.shape[0]
    n_out = wh_t.shape[0]
    kernel = functools.partial(_fused_conv_heads_kernel,
                               wp=wp, acc_pad=acc_pad, c_in=C)
    return pl.pallas_call(
        kernel,
        out_shape=jax.ShapeDtypeStruct((B, n_out, acc_pad), jnp.float32),
        grid=(B,),
        in_specs=[
            pl.BlockSpec((None, C, Lflat), lambda b: (b, 0, 0)),
            pl.BlockSpec((Cf, 9 * C), lambda b: (0, 0)),
            pl.BlockSpec((Cf, 1), lambda b: (0, 0)),
            pl.BlockSpec((n_out, Cf), lambda b: (0, 0)),
            pl.BlockSpec((n_out, 1), lambda b: (0, 0)),
        ],
        out_specs=pl.BlockSpec((None, n_out, acc_pad), lambda b: (b, 0, 0)),
        scratch_shapes=[pltpu.VMEM((9 * C, acc_pad), jnp.float32)],
        compiler_params=pltpu.CompilerParams(
            dimension_semantics=("parallel",),
            # TODO(synk): raise toward ~96 MiB (v5e/v6e) once real-resolution
            # row tiles are chosen; keep <= 64 MiB total for v7x.
            vmem_limit_bytes=32 * 1024 * 1024),
    )(xflat, wcr, bc, wh_t, bh)


# ============================================================================
# Kernel 2: combine_semantic_and_instance_outputs (per image).
#   order_ref : SMEM (B, NI) int32  instance channel visited at step i (sorted
#                                   by descending score)
#   ok_ref    : SMEM (B, NI) int32  1 iff sorted score >= confidence threshold
#   heads_ref : (n_out_pad, R, 128) f32  kernel-1 output (rows 0..K-1 = sem
#                                   logits, rows K..K+NI-1 = mask logits)
#   vmask_ref : (R, 128) int32      1 on real pixels, 0 on width/tail padding
#   pan_ref   : (R, 128) int32      panoptic ids
#   meta_ref  : (1, meta_w) int32   packed [inst ids | stuff ids | stuff areas]
# ============================================================================
def _combine_kernel(order_ref, ok_ref, heads_ref, vmask_ref, pan_ref, meta_ref,
                    *, K, NI, overlap_th, stuff_limit, meta_w):
    b = pl.program_id(0)
    R, L = vmask_ref.shape
    valid = vmask_ref[...] != 0                                   # (R, L) bool

    # --- per-pixel argmax over semantic classes (first occurrence on ties) --
    def argmax_body(c, carry):
        bv, bi = carry
        row = heads_ref[c]                                        # (R, L)
        upd = row > bv
        return jnp.where(upd, row, bv), jnp.where(upd, c, bi)

    _, best_idx = jax.lax.fori_loop(
        1, K, argmax_body,
        (heads_ref[0], jnp.zeros((R, L), jnp.int32)), unroll=True)
    best_idx = jnp.where(valid, best_idx, 0)      # pad pixels -> class 0 (never stuff)

    meta_iota = jax.lax.broadcasted_iota(jnp.int32, (1, meta_w), 1)

    # --- things: instances in descending-score order ------------------------
    # ("break" in the reference == skip here; valid because scores are sorted)
    def inst_body(i, carry):
        panoptic, seg_count, meta = carry
        idx = order_ref[b, i]
        ok = ok_ref[b, i] != 0
        mask = jnp.logical_and(heads_ref[K + idx] > 0.0, valid)
        mask_i = mask.astype(jnp.int32)
        mask_area = jnp.sum(mask_i)
        inter_area = jnp.sum(jnp.where(panoptic > 0, mask_i, 0))
        take = jnp.logical_and(
            ok,
            jnp.logical_and(
                mask_area > 0,
                inter_area.astype(jnp.float32)
                <= overlap_th * mask_area.astype(jnp.float32)))
        new_id = seg_count + 1
        panoptic = jnp.where(
            jnp.logical_and(take, jnp.logical_and(mask, panoptic == 0)),
            new_id, panoptic)
        meta = jnp.where(jnp.logical_and(meta_iota == i, take), new_id, meta)
        seg_count = jnp.where(take, new_id, seg_count)
        return panoptic, seg_count, meta

    panoptic, seg_count, meta = jax.lax.fori_loop(
        0, NI, inst_body,
        (jnp.zeros((R, L), jnp.int32), jnp.int32(0),
         jnp.zeros((1, meta_w), jnp.int32)),
        unroll=True)

    # --- stuff: contiguous class ids 1..K-1 (absent ids have area 0) --------
    def stuff_body(c, carry):
        panoptic, seg_count, meta = carry
        mask = jnp.logical_and(best_idx == c, panoptic == 0)
        area = jnp.sum(mask.astype(jnp.int32))
        take = area >= stuff_limit
        new_id = seg_count + 1
        panoptic = jnp.where(jnp.logical_and(take, mask), new_id, panoptic)
        meta = jnp.where(jnp.logical_and(meta_iota == NI + c, take), new_id, meta)
        meta = jnp.where(jnp.logical_and(meta_iota == NI + K + c, take), area, meta)
        seg_count = jnp.where(take, new_id, seg_count)
        return panoptic, seg_count, meta

    panoptic, seg_count, meta = jax.lax.fori_loop(
        1, K, stuff_body, (panoptic, seg_count, meta), unroll=True)

    pan_ref[...] = panoptic
    meta_ref[...] = meta


def pallas_combine(heads4, vmask, order, score_ok, *, K, NI,
                   overlap_th, stuff_limit, meta_w):
    B, n_out_pad, R, L = heads4.shape
    kernel = functools.partial(
        _combine_kernel, K=K, NI=NI, overlap_th=float(overlap_th),
        stuff_limit=int(stuff_limit), meta_w=meta_w)

    grid_spec = pltpu.PrefetchScalarGridSpec(
        num_scalar_prefetch=2,
        grid=(B,),
        in_specs=[
            pl.BlockSpec((None, n_out_pad, R, L), lambda b, o, s: (b, 0, 0, 0)),
            pl.BlockSpec((R, L), lambda b, o, s: (0, 0)),
        ],
        out_specs=[
            pl.BlockSpec((None, R, L), lambda b, o, s: (b, 0, 0)),
            pl.BlockSpec((None, 1, meta_w), lambda b, o, s: (b, 0, 0)),
        ],
    )
    out_shapes = (
        jax.ShapeDtypeStruct((B, R, L), jnp.int32),
        jax.ShapeDtypeStruct((B, 1, meta_w), jnp.int32),
    )
    return pl.pallas_call(
        kernel,
        grid_spec=grid_spec,
        out_shape=out_shapes,
        compiler_params=pltpu.CompilerParams(
            dimension_semantics=("parallel",),
            vmem_limit_bytes=32 * 1024 * 1024),
    )(order.astype(jnp.int32), score_ok.astype(jnp.int32), heads4, vmask)


# ============================================================================
# PanopticFPN (synthetic, inference-only)
# ============================================================================
class PanopticFPNPallas:
    def __init__(self, key, *, c_in=3, c_feat=32, num_classes=8, num_inst=4,
                 combine_on=True, overlap_th=0.5, stuff_area_limit=20,
                 conf_th=0.3, instance_loss_weight=1.0):
        self.c_in = c_in
        self.c_feat = c_feat
        self.num_classes = num_classes
        self.num_inst = num_inst
        self.combine_on = combine_on
        self.combine_overlap_threshold = overlap_th
        self.combine_stuff_area_limit = stuff_area_limit
        self.combine_instances_confidence_threshold = conf_th
        self.instance_loss_weight = instance_loss_weight  # unused at inference

        k = jax.random.split(key, 6)
        # backbone stand-in: one 3x3 same conv + ReLU
        self.w_backbone = 0.1 * jax.random.normal(k[0], (9 * c_in, c_feat), jnp.float32)
        self.b_backbone = 0.01 * jax.random.normal(k[1], (c_feat,), jnp.float32)
        # sem_seg_head stand-in: 1x1 conv to num_classes
        self.w_sem = 0.1 * jax.random.normal(k[2], (c_feat, num_classes), jnp.float32)
        self.b_sem = 0.01 * jax.random.normal(k[3], (num_classes,), jnp.float32)
        # instance mask head stand-in: 1x1 conv to num_inst mask logits
        self.w_inst = 0.1 * jax.random.normal(k[4], (c_feat, num_inst), jnp.float32)
        self.b_inst = 0.01 * jax.random.normal(k[5], (num_inst,), jnp.float32)

        # detectron2 default COCO pixel statistics
        self.pixel_mean = jnp.array([103.53, 116.28, 123.675], jnp.float32)
        self.pixel_std = jnp.array([57.375, 57.12, 58.395], jnp.float32)

        # ---- fold pixel normalization into the conv -----------------------
        inv_std = 1.0 / self.pixel_std
        wb = self.w_backbone.reshape(9, c_in, c_feat)
        wc_folded = wb * inv_std[None, :, None]                      # (9, C, Cf)
        bias_shift = jnp.einsum("c,tcf->f", self.pixel_mean * inv_std, wb)
        self.bc_col = (self.b_backbone - bias_shift).reshape(c_feat, 1)
        # (9, C, Cf) -> (Cf, 9*C): ONE contraction over all taps*channels.
        self.wcr = jnp.transpose(wc_folded, (2, 0, 1)).reshape(
            c_feat, 9 * c_in).astype(jnp.bfloat16)

        # ---- concatenate + pad + transpose the two 1x1-conv heads ---------
        n_out = num_classes + num_inst
        n_out_pad = ((n_out + 7) // 8) * 8
        self.n_out = n_out
        self.n_out_pad = n_out_pad
        wh = jnp.concatenate([self.w_sem, self.w_inst], axis=1)      # (Cf, n_out)
        bh = jnp.concatenate([self.b_sem, self.b_inst], axis=0)      # (n_out,)
        wh = jnp.pad(wh, ((0, 0), (0, n_out_pad - n_out)))
        bh = jnp.pad(bh, (0, n_out_pad - n_out))
        self.wh_t = wh.T                                             # (n_out_pad, Cf)
        self.bh_col = bh.reshape(n_out_pad, 1)

    # -------------------------- forward (inference) -------------------------
    def forward(self, images):
        """images: (B, C_in, H, W) float32, NCHW (like PyTorch)."""
        B, C, H, W = images.shape
        assert C == self.c_in
        K, NI = self.num_classes, self.num_inst
        Wp = W + 2
        acc_rows = H * Wp                      # output pixels per image in-kernel
        acc_pad = ((acc_rows + 127) // 128) * 128   # lane-aligned output pixel axis
        # flattened input must cover the furthest tap window (2*Wp + 2)
        Lflat = max((H + 2) * Wp, 2 * Wp + 2 + acc_pad)
        Lflat = ((Lflat + 127) // 128) * 128

        # spatial pad with pixel_mean so the FOLDED normalization reproduces
        # zero-padding-after-normalization exactly (tail pad too); flatten the
        # rows channel-major so pixels live on the lane axis everywhere.
        mean4 = self.pixel_mean.reshape(1, C, 1, 1)
        xpad = jnp.broadcast_to(mean4, (B, C, H + 2, Wp)).astype(jnp.float32)
        xpad = jax.lax.dynamic_update_slice(xpad, images.astype(jnp.float32),
                                            (0, 0, 1, 1))
        xflat = xpad.reshape(B, C, (H + 2) * Wp)
        tail = Lflat - (H + 2) * Wp
        if tail > 0:
            tail_fill = jnp.broadcast_to(self.pixel_mean.reshape(1, C, 1),
                                         (B, C, tail)).astype(jnp.float32)
            xflat = jnp.concatenate([xflat, tail_fill], axis=2)
        xflat = xflat.astype(jnp.bfloat16)     # halve HBM traffic of dominant input

        # fused backbone conv (+folded norm, +ReLU) + both heads; output is
        # channel-major (B, n_out_pad, acc_pad) with pixels lane-dense.
        heads_p = fused_backbone_and_heads(
            xflat, self.wcr, self.bc_col, self.wh_t, self.bh_col,
            wp=Wp, acc_pad=acc_pad)

        # valid (unpadded) pixels for the user-facing sem_seg / instances.
        heads_body = heads_p[:, :, :acc_rows].reshape(
            B, self.n_out_pad, H, Wp)[:, :, :, :W]
        sem_seg_results = heads_body[:, :K]                          # (B, K, H, W)
        mask_logits = heads_body[:, K:K + NI]                        # (B, NI, H, W)
        mask_flat = mask_logits.reshape(B, NI, H * W)

        # proposal_generator + roi_heads stand-in: per-instance scores/classes
        scores = jax.nn.sigmoid(jnp.mean(mask_flat, axis=2))         # (B, NI)
        pred_classes = jnp.tile(jnp.arange(NI, dtype=jnp.int32) % 3, (B, 1))

        # sort instances by descending score (torch.argsort(-scores)); the
        # masks themselves are NOT gathered — the combine kernel follows the
        # permutation via scalar prefetch.
        order = jnp.argsort(-scores, axis=1).astype(jnp.int32)
        scores_sorted = jnp.take_along_axis(scores, order, axis=1)
        classes_sorted = jnp.take_along_axis(pred_classes, order, axis=1)
        score_ok = (scores_sorted >=
                    self.combine_instances_confidence_threshold).astype(jnp.int32)

        results = {
            "sem_seg": sem_seg_results,
            "instances": {
                "pred_masks": mask_logits > 0.0,
                "scores": scores,
                "pred_classes": pred_classes,
            },
        }

        if self.combine_on:
            R = acc_pad // 128
            heads4 = heads_p.reshape(B, self.n_out_pad, R, 128)
            # static validity mask: drops width-pad columns and tail rows.
            q = np.arange(acc_pad)
            vmask_np = ((q % Wp) < W) & (q < acc_rows)
            vmask = jnp.asarray(vmask_np.reshape(R, 128).astype(np.int32))
            meta_w = max(128, ((NI + 2 * K + 127) // 128) * 128)

            pan, meta = pallas_combine(
                heads4, vmask, order, score_ok,
                K=K, NI=NI,
                overlap_th=self.combine_overlap_threshold,
                stuff_limit=self.combine_stuff_area_limit,
                meta_w=meta_w)
            pan_img = pan.reshape(B, acc_pad)[:, :acc_rows].reshape(
                B, H, Wp)[:, :, :W]
            results["panoptic_seg"] = pan_img
            results["_panoptic_meta"] = (meta, scores_sorted, classes_sorted, order)
        return results

    # host-side reconstruction of segments_info (list[dict] return format)
    def segments_info(self, results):
        meta, scores_sorted, classes_sorted, order = jax.tree_util.tree_map(
            np.asarray, results["_panoptic_meta"])
        K, NI = self.num_classes, self.num_inst
        B = meta.shape[0]
        all_infos = []
        for n in range(B):
            segs = []
            for i in range(NI):
                sid = int(meta[n, 0, i])
                if sid > 0:
                    segs.append({"id": sid, "isthing": True,
                                 "score": float(scores_sorted[n, i]),
                                 "category_id": int(classes_sorted[n, i]),
                                 "instance_id": int(order[n, i])})
            for c in range(1, K):
                sid = int(meta[n, 0, NI + c])
                if sid > 0:
                    segs.append({"id": sid, "isthing": False,
                                 "category_id": c,
                                 "area": int(meta[n, 0, NI + K + c])})
            all_infos.append(segs)
        return all_infos


# ----------------------------------------------------------------------------
if __name__ == "__main__":
    key = jax.random.PRNGKey(0)
    k_img, k_model = jax.random.split(key)

    B, C, H, W = 2, 3, 16, 16
    images = jax.random.uniform(k_img, (B, C, H, W), jnp.float32, 0.0, 255.0)

    model = PanopticFPNPallas(k_model, c_in=C, c_feat=32,
                              num_classes=8, num_inst=4,
                              combine_on=True, overlap_th=0.5,
                              stuff_area_limit=20, conf_th=0.3)

    results = model.forward(images)
    jax.block_until_ready(results["sem_seg"])
    jax.block_until_ready(results["panoptic_seg"])
    _ = model.segments_info(results)  # host-side metadata, mirrors list[dict]

    print("KERNEL_OK")
</pallas_src>

<mosaic_0001>
module attributes {stable_mosaic.version = 11 : i64} {
  func.func @_fused_conv_heads_kernel(%arg0: i32, %arg1: memref<1x3x512xbf16, #tpu.memory_space<vmem>>, %arg2: memref<32x27xbf16, #tpu.memory_space<vmem>>, %arg3: memref<32x1xf32, #tpu.memory_space<vmem>>, %arg4: memref<16x32xf32, #tpu.memory_space<vmem>>, %arg5: memref<16x1xf32, #tpu.memory_space<vmem>>, %arg6: memref<1x16x384xf32, #tpu.memory_space<vmem>>, %arg7: memref<27x384xf32, #tpu.memory_space<vmem>>) attributes {dimension_semantics = [#tpu.dimension_semantics<parallel>], iteration_bounds = array<i64: 2>, scalar_prefetch = 0 : i64, scratch_operands = 1 : i64, tpu.core_type = #tpu.core_type<tc>, window_params = [{transform_indices = @transform_0, window_bounds = array<i64: 1, 3, 512>}, {pipeline_mode = #tpu.pipeline_mode<synchronous>, transform_indices = @transform_1, window_bounds = array<i64: 32, 27>}, {pipeline_mode = #tpu.pipeline_mode<synchronous>, transform_indices = @transform_2, window_bounds = array<i64: 32, 1>}, {pipeline_mode = #tpu.pipeline_mode<synchronous>, transform_indices = @transform_3, window_bounds = array<i64: 16, 32>}, {pipeline_mode = #tpu.pipeline_mode<synchronous>, transform_indices = @transform_4, window_bounds = array<i64: 16, 1>}, {transform_indices = @transform_5, window_bounds = array<i64: 1, 16, 384>}]} {
    %c0 = arith.constant 0 : index
    %c0_0 = arith.constant 0 : index
    %c0_1 = arith.constant 0 : index
    %0 = vector.load %arg1[%c0, %c0_0, %c0_1] : memref<1x3x512xbf16, #tpu.memory_space<vmem>>, vector<1x3x384xbf16>
    %1 = vector.shape_cast %0 : vector<1x3x384xbf16> to vector<3x384xbf16>
    %2 = arith.extf %1 : vector<3x384xbf16> to vector<3x384xf32>
    %c0_2 = arith.constant 0 : index
    %c0_3 = arith.constant 0 : index
    %3 = vector.load %arg7[%c0_2, %c0_3] : memref<27x384xf32, #tpu.memory_space<vmem>>, vector<3x384xf32>
    tpu.vector_store %arg7[%c0_2, %c0_3], %2 {strides = array<i32>} : memref<27x384xf32, #tpu.memory_space<vmem>>, vector<3x384xf32>,
    %c0_4 = arith.constant 0 : index
    %c0_5 = arith.constant 0 : index
    %c1 = arith.constant 1 : index
    %4 = vector.load %arg1[%c0_4, %c0_5, %c1] : memref<1x3x512xbf16, #tpu.memory_space<vmem>>, vector<1x3x384xbf16>
    %5 = vector.shape_cast %4 : vector<1x3x384xbf16> to vector<3x384xbf16>
    %6 = arith.extf %5 : vector<3x384xbf16> to vector<3x384xf32>
    %c3 = arith.constant 3 : index
    %c0_6 = arith.constant 0 : index
    %7 = vector.load %arg7[%c3, %c0_6] : memref<27x384xf32, #tpu.memory_space<vmem>>, vector<3x384xf32>
    tpu.vector_store %arg7[%c3, %c0_6], %6 {strides = array<i32>} : memref<27x384xf32, #tpu.memory_space<vmem>>, vector<3x384xf32>,
    %c0_7 = arith.constant 0 : index
    %c0_8 = arith.constant 0 : index
    %c2 = arith.constant 2 : index
    %8 = vector.load %arg1[%c0_7, %c0_8, %c2] : memref<1x3x512xbf16, #tpu.memory_space<vmem>>, vector<1x3x384xbf16>
    %9 = vector.shape_cast %8 : vector<1x3x384xbf16> to vector<3x384xbf16>
    %10 = arith.extf %9 : vector<3x384xbf16> to vector<3x384xf32>
    %c6 = arith.constant 6 : index
    %c0_9 = arith.constant 0 : index
    %11 = vector.load %arg7[%c6, %c0_9] : memref<27x384xf32, #tpu.memory_space<vmem>>, vector<3x384xf32>
    tpu.vector_store %arg7[%c6, %c0_9], %10 {strides = array<i32>} : memref<27x384xf32, #tpu.memory_space<vmem>>, vector<3x384xf32>,
    %c0_10 = arith.constant 0 : index
    %c0_11 = arith.constant 0 : index
    %c18 = arith.constant 18 : index
    %12 = vector.load %arg1[%c0_10, %c0_11, %c18] : memref<1x3x512xbf16, #tpu.memory_space<vmem>>, vector<1x3x384xbf16>
    %13 = vector.shape_cast %12 : vector<1x3x384xbf16> to vector<3x384xbf16>
    %14 = arith.extf %13 : vector<3x384xbf16> to vector<3x384xf32>
    %c9 = arith.constant 9 : index
    %c0_12 = arith.constant 0 : index
    %15 = vector.load %arg7[%c9, %c0_12] : memref<27x384xf32, #tpu.memory_space<vmem>>, vector<3x384xf32>
    tpu.vector_store %arg7[%c9, %c0_12], %14 {strides = array<i32>} : memref<27x384xf32, #tpu.memory_space<vmem>>, vector<3x384xf32>,
    %c0_13 = arith.constant 0 : index
    %c0_14 = arith.constant 0 : index
    %c19 = arith.constant 19 : index
    %16 = vector.load %arg1[%c0_13, %c0_14, %c19] : memref<1x3x512xbf16, #tpu.memory_space<vmem>>, vector<1x3x384xbf16>
    %17 = vector.shape_cast %16 : vector<1x3x384xbf16> to vector<3x384xbf16>
    %18 = arith.extf %17 : vector<3x384xbf16> to vector<3x384xf32>
    %c12 = arith.constant 12 : index
    %c0_15 = arith.constant 0 : index
    %19 = vector.load %arg7[%c12, %c0_15] : memref<27x384xf32, #tpu.memory_space<vmem>>, vector<3x384xf32>
    tpu.vector_store %arg7[%c12, %c0_15], %18 {strides = array<i32>} : memref<27x384xf32, #tpu.memory_space<vmem>>, vector<3x384xf32>,
    %c0_16 = arith.constant 0 : index
    %c0_17 = arith.constant 0 : index
    %c20 = arith.constant 20 : index
    %20 = vector.load %arg1[%c0_16, %c0_17, %c20] : memref<1x3x512xbf16, #tpu.memory_space<vmem>>, vector<1x3x384xbf16>
    %21 = vector.shape_cast %20 : vector<1x3x384xbf16> to vector<3x384xbf16>
    %22 = arith.extf %21 : vector<3x384xbf16> to vector<3x384xf32>
    %c15 = arith.constant 15 : index
    %c0_18 = arith.constant 0 : index
    %23 = vector.load %arg7[%c15, %c0_18] : memref<27x384xf32, #tpu.memory_space<vmem>>, vector<3x384xf32>
    tpu.vector_store %arg7[%c15, %c0_18], %22 {strides = array<i32>} : memref<27x384xf32, #tpu.memory_space<vmem>>, vector<3x384xf32>,
    %c0_19 = arith.constant 0 : index
    %c0_20 = arith.constant 0 : index
    %c36 = arith.constant 36 : index
    %24 = vector.load %arg1[%c0_19, %c0_20, %c36] : memref<1x3x512xbf16, #tpu.memory_space<vmem>>, vector<1x3x384xbf16>
    %25 = vector.shape_cast %24 : vector<1x3x384xbf16> to vector<3x384xbf16>
    %26 = arith.extf %25 : vector<3x384xbf16> to vector<3x384xf32>
    %c18_21 = arith.constant 18 : index
    %c0_22 = arith.constant 0 : index
    %27 = vector.load %arg7[%c18_21, %c0_22] : memref<27x384xf32, #tpu.memory_space<vmem>>, vector<3x384xf32>
    tpu.vector_store %arg7[%c18_21, %c0_22], %26 {strides = array<i32>} : memref<27x384xf32, #tpu.memory_space<vmem>>, vector<3x384xf32>,
    %c0_23 = arith.constant 0 : index
    %c0_24 = arith.constant 0 : index
    %c37 = arith.constant 37 : index
    %28 = vector.load %arg1[%c0_23, %c0_24, %c37] : memref<1x3x512xbf16, #tpu.memory_space<vmem>>, vector<1x3x384xbf16>
    %29 = vector.shape_cast %28 : vector<1x3x384xbf16> to vector<3x384xbf16>
    %30 = arith.extf %29 : vector<3x384xbf16> to vector<3x384xf32>
    %c21 = arith.constant 21 : index
    %c0_25 = arith.constant 0 : index
    %31 = vector.load %arg7[%c21, %c0_25] : memref<27x384xf32, #tpu.memory_space<vmem>>, vector<3x384xf32>
    tpu.vector_store %arg7[%c21, %c0_25], %30 {strides = array<i32>} : memref<27x384xf32, #tpu.memory_space<vmem>>, vector<3x384xf32>,
    %c0_26 = arith.constant 0 : index
    %c0_27 = arith.constant 0 : index
    %c38 = arith.constant 38 : index
    %32 = vector.load %arg1[%c0_26, %c0_27, %c38] : memref<1x3x512xbf16, #tpu.memory_space<vmem>>, vector<1x3x384xbf16>
    %33 = vector.shape_cast %32 : vector<1x3x384xbf16> to vector<3x384xbf16>
    %34 = arith.extf %33 : vector<3x384xbf16> to vector<3x384xf32>
    %c24 = arith.constant 24 : index
    %c0_28 = arith.constant 0 : index
    %35 = vector.load %arg7[%c24, %c0_28] : memref<27x384xf32, #tpu.memory_space<vmem>>, vector<3x384xf32>
    tpu.vector_store %arg7[%c24, %c0_28], %34 {strides = array<i32>} : memref<27x384xf32, #tpu.memory_space<vmem>>, vector<3x384xf32>,
    %c0_29 = arith.constant 0 : index
    %c0_30 = arith.constant 0 : index
    %36 = vector.load %arg7[%c0_29, %c0_30] : memref<27x384xf32, #tpu.memory_space<vmem>>, vector<27x384xf32>
    %37 = arith.truncf %36 : vector<27x384xf32> to vector<27x384xbf16>
    %c0_31 = arith.constant 0 : index
    %c0_32 = arith.constant 0 : index
    %38 = vector.load %arg2[%c0_31, %c0_32] : memref<32x27xbf16, #tpu.memory_space<vmem>>, vector<32x27xbf16>
    %cst = arith.constant dense<0.000000e+00> : vector<32x384xf32>
    %39 = tpu.matmul %38, %37, %cst {dimension_numbers = #tpu.dot_dimension_numbers<[1], [0], [0], [1], [0, 0, 1, 1], [], []>} : vector<32x27xbf16>, vector<27x384xbf16>, vector<32x384xf32> -> vector<32x384xf32>
    %c0_33 = arith.constant 0 : index
    %c0_34 = arith.constant 0 : index
    %40 = vector.load %arg3[%c0_33, %c0_34] : memref<32x1xf32, #tpu.memory_space<vmem>>, vector<32x1xf32>
    %41 = vector.broadcast %40 : vector<32x1xf32> to vector<32x384xf32>
    %42 = arith.addf %39, %41 : vector<32x384xf32>
    %cst_35 = arith.constant 0.000000e+00 : f32
    %43 = vector.broadcast %cst_35 : f32 to vector<32x384xf32>
    %44 = arith.maximumf %42, %43 : vector<32x384xf32>
    %c0_36 = arith.constant 0 : index
    %c0_37 = arith.constant 0 : index
    %45 = vector.load %arg4[%c0_36, %c0_37] : memref<16x32xf32, #tpu.memory_space<vmem>>, vector<16x32xf32>
    %cst_38 = arith.constant dense<0.000000e+00> : vector<16x384xf32>
    %46 = tpu.matmul %45, %44, %cst_38 {dimension_numbers = #tpu.dot_dimension_numbers<[1], [0], [0], [1], [0, 0, 1, 1], [], []>} : vector<16x32xf32>, vector<32x384xf32>, vector<16x384xf32> -> vector<16x384xf32>
    %c0_39 = arith.constant 0 : index
    %c0_40 = arith.constant 0 : index
    %47 = vector.load %arg5[%c0_39, %c0_40] : memref<16x1xf32, #tpu.memory_space<vmem>>, vector<16x1xf32>
    %48 = vector.broadcast %47 : vector<16x1xf32> to vector<16x384xf32>
    %49 = arith.addf %46, %48 : vector<16x384xf32>
    %c0_41 = arith.constant 0 : index
    %c0_42 = arith.constant 0 : index
    %c0_43 = arith.constant 0 : index
    %50 = vector.load %arg6[%c0_41, %c0_42, %c0_43] : memref<1x16x384xf32, #tpu.memory_space<vmem>>, vector<1x16x384xf32>
    %51 = vector.shape_cast %50 : vector<1x16x384xf32> to vector<16x384xf32>
    %52 = vector.shape_cast %49 : vector<16x384xf32> to vector<1x16x384xf32>
    tpu.vector_store %arg6[%c0_41, %c0_42, %c0_43], %52 {strides = array<i32>} : memref<1x16x384xf32, #tpu.memory_space<vmem>>, vector<1x16x384xf32>,
    return
  }
  func.func @transform_0(%arg0: i32) -> (i32, i32, i32) {
    %c0_i32 = arith.constant 0 : i32
    %c0_i32_0 = arith.constant 0 : i32
    %c0_i32_1 = arith.constant 0 : i32
    return %arg0, %c0_i32, %c0_i32_0 : i32, i32, i32
  }
  func.func @transform_1(%arg0: i32) -> (i32, i32) {
    %c0_i32 = arith.constant 0 : i32
    %c0_i32_0 = arith.constant 0 : i32
    %c0_i32_1 = arith.constant 0 : i32
    return %c0_i32, %c0_i32_0 : i32, i32
  }
  func.func @transform_2(%arg0: i32) -> (i32, i32) {
    %c0_i32 = arith.constant 0 : i32
    %c0_i32_0 = arith.constant 0 : i32
    %c0_i32_1 = arith.constant 0 : i32
    return %c0_i32, %c0_i32_0 : i32, i32
  }
  func.func @transform_3(%arg0: i32) -> (i32, i32) {
    %c0_i32 = arith.constant 0 : i32
    %c0_i32_0 = arith.constant 0 : i32
    %c0_i32_1 = arith.constant 0 : i32
    return %c0_i32, %c0_i32_0 : i32, i32
  }
  func.func @transform_4(%arg0: i32) -> (i32, i32) {
    %c0_i32 = arith.constant 0 : i32
    %c0_i32_0 = arith.constant 0 : i32
    %c0_i32_1 = arith.constant 0 : i32
    return %c0_i32, %c0_i32_0 : i32, i32
  }
  func.func @transform_5(%arg0: i32) -> (i32, i32, i32) {
    %c0_i32 = arith.constant 0 : i32
    %c0_i32_0 = arith.constant 0 : i32
    %c0_i32_1 = arith.constant 0 : i32
    return %arg0, %c0_i32, %c0_i32_0 : i32, i32, i32
  }
}

</mosaic_0001>

<llo_original>
// kernel: tpu_custom_call.1
$region0: #{tpu_custom_call.1}
  #allocation0 [shape = 'u32[]', space=smem, size = 0x4, offset = 0x4, fixed_abs, tag = 'smem constant byte address 0x4 - core index']
  #allocation1 [shape = 'u32[144,128]{1,0:T(1,128)}', space=vmem, size = 0x12000, scoped, tag = 'internal scratch']
  #allocation2 [shape = 'f32[27,384]{1,0:T(8,128)}', space=vmem, size = 0xc000, scoped, tag = 'scratch operand']
  %s0 = inlined_call_operand.vmem [shape: bf16[2,3,512], index: 0, kind: input, shape index: {}]
  %s1 = inlined_call_operand.vmem [shape: bf16[32,27], index: 1, kind: input, shape index: {}]
  %s2 = inlined_call_operand.vmem [shape: f32[32,1], index: 2, kind: input, shape index: {}]
  %s3 = inlined_call_operand.vmem [shape: f32[16,32], index: 3, kind: input, shape index: {}]
  %s4 = inlined_call_operand.vmem [shape: f32[16,1], index: 4, kind: input, shape index: {}]
  %s5 = inlined_call_operand.hbm [shape: f32[2,16,384], index: 5, kind: output, shape index: {}]
  %s6 = sld [smem:[#allocation0]]
  $region53: #{tpu_custom_call.1} parent=0
    _
  %s8 = ssub.s32 1, %s6
  %s9 = scalar_select 0, %s8, %s6
  $region1: #{tpu_custom_call.1} parent=0
    #allocation3 [shape = 'u8[49152]{0}', space=vmem, size = 0xc000, scoped, tag = 'output window, operand 0']
    #allocation4 [shape = 's32[2]{0}', space=sflag, size = 0x8, scoped, tag = 'scoped memory for tpu_custom_call.1']
    %10 = vsyncpa [#allocation4], 0
    %s11 = scalar_lea.sflag [#allocation4], 1
    %12 = vsyncpa %s11, 0
    loop: start=0, step=1, limit=4
    $region2: #{tpu_custom_call.1} parent=1 // loop_pre_header
      _
    $region3: #{tpu_custom_call.1} parent=1 // loop_header
      %s14 = sphi 0, %s18
      %p15 = scmp.ge.s32.totalorder %s14, 4
      %s24 = sphi 0, %s26
      %s27 = sphi 0, %s24
      %s28 = sphi 0, %s27
      %s44 = sphi 0, %s28
      %s48 = sphi 0, %s48
      %s50 = sphi 0, %s48
      %s51 = sphi 0, %s50
      %s65 = sphi 0, %s51
      %s69 = sphi 0, %s69
      %s71 = sphi 0, %s69
      %s72 = sphi 0, %s71
      %s86 = sphi 0, %s72
      %s90 = sphi 0, %s90
      %s92 = sphi 0, %s90
      %s93 = sphi 0, %s92
      %s107 = sphi 0, %s93
      %s111 = sphi 0, %s111
      %s113 = sphi 0, %s111
      %s114 = sphi 0, %s113
      %s128 = sphi 0, %s114
      %s134 = sphi 0, %s136
      %s137 = sphi 0, %s134
      %s138 = sphi 0, %s137
      %s154 = sphi 0, %s138
    $region4: #{tpu_custom_call.1} parent=1 // loop_header_branch
      %17 = sbr.rel (%p15) target = $region8
    $region5: #{tpu_custom_call.1} parent=1 // loop_body
      %s19 = ssub.s32 %s14, 1
      %s20 = ssub.s32 %s14, 2
      %s21 = sadd.s32 %s14, 1
      %s22 = ssub.s32 %s14, %s21
      %p23 = scmp.eq.s32.totalorder %s22, 0
      %s25 = sadd.s32 %s24, 1
      %s26 = scalar_select %p23, %s24, %s25
      %p29 = pneg %p23
      %p30 = scmp.eq.s32.totalorder %s14, 1
      %p31 = por %p29, %p30
      %p32 = scmp.ne.s32.totalorder %s24, %s27
      %p33 = scmp.eq.s32.totalorder %s14, 0
      %p34 = por %p32, %p33
      %p35 = scmp.ne.s32.totalorder %s24, %s27
      %p36 = scmp.eq.s32.totalorder %s19, 1
      %p37 = por %p35, %p36
      %p38 = scmp.ne.s32.totalorder %s27, %s28
      %p39 = scmp.eq.s32.totalorder %s19, 0
      %p40 = por %p38, %p39
      %p41 = scmp.ne.s32.totalorder %s27, %s28
      %p42 = scmp.eq.s32.totalorder %s20, 1
      %p43 = por %p41, %p42
      %p45 = scmp.ne.s32.totalorder %s28, %s44
      %p46 = scmp.eq.s32.totalorder %s20, 0
      %p47 = por %p45, %p46
      %s49 = sadd.s32 %s48, 1
      %p52 = scmp.eq.s32.totalorder %s14, 1
      %p53 = scmp.ne.s32.totalorder %s48, %s50
      %p54 = scmp.eq.s32.totalorder %s14, 0
      %p55 = por %p53, %p54
      %p56 = scmp.ne.s32.totalorder %s48, %s50
      %p57 = scmp.eq.s32.totalorder %s19, 1
      %p58 = por %p56, %p57
      %p59 = scmp.ne.s32.totalorder %s50, %s51
      %p60 = scmp.eq.s32.totalorder %s19, 0
      %p61 = por %p59, %p60
      %p62 = scmp.ne.s32.totalorder %s50, %s51
      %p63 = scmp.eq.s32.totalorder %s20, 1
      %p64 = por %p62, %p63
      %p66 = scmp.ne.s32.totalorder %s51, %s65
      %p67 = scmp.eq.s32.totalorder %s20, 0
      %p68 = por %p66, %p67
      %s70 = sadd.s32 %s69, 1
      %p73 = scmp.eq.s32.totalorder %s14, 1
      %p74 = scmp.ne.s32.totalorder %s69, %s71
      %p75 = scmp.eq.s32.totalorder %s14, 0
      %p76 = por %p74, %p75
      %p77 = scmp.ne.s32.totalorder %s69, %s71
      %p78 = scmp.eq.s32.totalorder %s19, 1
      %p79 = por %p77, %p78
      %p80 = scmp.ne.s32.totalorder %s71, %s72
      %p81 = scmp.eq.s32.totalorder %s19, 0
      %p82 = por %p80, %p81
      %p83 = scmp.ne.s32.totalorder %s71, %s72
      %p84 = scmp.eq.s32.totalorder %s20, 1
      %p85 = por %p83, %p84
      %p87 = scmp.ne.s32.totalorder %s72, %s86
      %p88 = scmp.eq.s32.totalorder %s20, 0
      %p89 = por %p87, %p88
      %s91 = sadd.s32 %s90, 1
      %p94 = scmp.eq.s32.totalorder %s14, 1
      %p95 = scmp.ne.s32.totalorder %s90, %s92
      %p96 = scmp.eq.s32.totalorder %s14, 0
      %p97 = por %p95, %p96
      %p98 = scmp.ne.s32.totalorder %s90, %s92
      %p99 = scmp.eq.s32.totalorder %s19, 1
      %p100 = por %p98, %p99
      %p101 = scmp.ne.s32.totalorder %s92, %s93
      %p102 = scmp.eq.s32.totalorder %s19, 0
      %p103 = por %p101, %p102
      %p104 = scmp.ne.s32.totalorder %s92, %s93
      %p105 = scmp.eq.s32.totalorder %s20, 1
      %p106 = por %p104, %p105
      %p108 = scmp.ne.s32.totalorder %s93, %s107
      %p109 = scmp.eq.s32.totalorder %s20, 0
      %p110 = por %p108, %p109
      %s112 = sadd.s32 %s111, 1
      %p115 = scmp.eq.s32.totalorder %s14, 1
      %p116 = scmp.ne.s32.totalorder %s111, %s113
      %p117 = scmp.eq.s32.totalorder %s14, 0
      %p118 = por %p116, %p117
      %p119 = scmp.ne.s32.totalorder %s111, %s113
      %p120 = scmp.eq.s32.totalorder %s19, 1
      %p121 = por %p119, %p120
      %p122 = scmp.ne.s32.totalorder %s113, %s114
      %p123 = scmp.eq.s32.totalorder %s19, 0
      %p124 = por %p122, %p123
      %p125 = scmp.ne.s32.totalorder %s113, %s114
      %p126 = scmp.eq.s32.totalorder %s20, 1
      %p127 = por %p125, %p126
      %p129 = scmp.ne.s32.totalorder %s114, %s128
      %p130 = scmp.eq.s32.totalorder %s20, 0
      %p131 = por %p129, %p130
      %s132 = ssub.s32 %s14, %s21
      %p133 = scmp.eq.s32.totalorder %s132, 0
      %s135 = sadd.s32 %s134, 1
      %s136 = scalar_select %p133, %s134, %s135
      %p139 = pneg %p133
      %p140 = scmp.eq.s32.totalorder %s14, 1
      %p141 = por %p139, %p140
      %p142 = scmp.ne.s32.totalorder %s134, %s137
      %p143 = scmp.eq.s32.totalorder %s14, 0
      %p144 = por %p142, %p143
      %p145 = scmp.ne.s32.totalorder %s134, %s137
      %p146 = scmp.eq.s32.totalorder %s19, 1
      %p147 = por %p145, %p146
      %p148 = scmp.ne.s32.totalorder %s137, %s138
      %p149 = scmp.eq.s32.totalorder %s19, 0
      %p150 = por %p148, %p149
      %p151 = scmp.ne.s32.totalorder %s137, %s138
      %p152 = scmp.eq.s32.totalorder %s20, 1
      %p153 = por %p151, %p152
      %p155 = scmp.ne.s32.totalorder %s138, %s154
      %p156 = scmp.eq.s32.totalorder %s20, 0
      %p157 = por %p155, %p156
      %p158 = scmp.le.s32.totalorder 1, %s14
      %p159 = scmp.lt.s32.totalorder %s14, 3
      %p160 = pnand %p158, %p159
      %p161 = pneg %p160
      // Predicated region
      $region9: #{tpu_custom_call.1} parent=5 // pred_check
        _
      $region10: #{tpu_custom_call.1} parent=5 // pred_check_branch
        %163 = sbr.rel (%p160) target = $region12
      $region11: #{tpu_custom_call.1} parent=5 // pred_region
        %s164 = ssub.s32 %s14, 1
        // Predicated region
        $region13: #{tpu_custom_call.1} parent=11 // pred_check
          %p165 = pneg %p61
        $region14: #{tpu_custom_call.1} parent=11 // pred_check_branch
          %167 = sbr.rel (%p165) target = $region16
        $region15: #{tpu_custom_call.1} parent=11 // pred_region
          _
        $region16: #{tpu_custom_call.1} parent=11 // pred_fallthru
          _
        // Predicated region
        $region17: #{tpu_custom_call.1} parent=11 // pred_check
          %p168 = pneg %p82
        $region18: #{tpu_custom_call.1} parent=11 // pred_check_branch
          %170 = sbr.rel (%p168) target = $region20
        $region19: #{tpu_custom_call.1} parent=11 // pred_region
          _
        $region20: #{tpu_custom_call.1} parent=11 // pred_fallthru
          _
        // Predicated region
        $region21: #{tpu_custom_call.1} parent=11 // pred_check
          %p171 = pneg %p103
        $region22: #{tpu_custom_call.1} parent=11 // pred_check_branch
          %173 = sbr.rel (%p171) target = $region24
        $region23: #{tpu_custom_call.1} parent=11 // pred_region
          _
        $region24: #{tpu_custom_call.1} parent=11 // pred_fallthru
          _
        // Predicated region
        $region25: #{tpu_custom_call.1} parent=11 // pred_check
          %p174 = pneg %p124
        $region26: #{tpu_custom_call.1} parent=11 // pred_check_branch
          %176 = sbr.rel (%p174) target = $region28
        $region27: #{tpu_custom_call.1} parent=11 // pred_region
          _
        $region28: #{tpu_custom_call.1} parent=11 // pred_fallthru
          _
      $region12: #{tpu_custom_call.1} parent=5 // pred_fallthru
        _
      %p177 = scmp.lt.s32.totalorder %s14, 2
      // Predicated region
      $region29: #{tpu_custom_call.1} parent=5 // pred_check
        %p178 = pneg %p177
      $region30: #{tpu_custom_call.1} parent=5 // pred_check_branch
        %180 = sbr.rel (%p178) target = $region32
      $region31: #{tpu_custom_call.1} parent=5 // pred_region
        // Predicated region
        $region33: #{tpu_custom_call.1} parent=31 // pred_check
          %p181 = pneg %p34
        $region34: #{tpu_custom_call.1} parent=31 // pred_check_branch
          %183 = sbr.rel (%p181) target = $region36
        $region35: #{tpu_custom_call.1} parent=31 // pred_region
          %p184 = scmp.lt.s32.totalorder %s14, 1
          %s185 = scalar_select %p184, %s14, 1
          %s186 = smul.addr %s185, 4
          %s187 = smul.addr %s186, 2
          %s188 = scalar_lea.vmem %s0, %s187
        $region36: #{tpu_custom_call.1} parent=31 // pred_fallthru
          _
      $region32: #{tpu_custom_call.1} parent=5 // pred_fallthru
        _
      %p189 = scmp.le.s32.totalorder 1, %s14
      %p190 = scmp.lt.s32.totalorder %s14, 3
      %p191 = pnand %p189, %p190
      %p192 = pneg %p191
      // Predicated region
      $region37: #{tpu_custom_call.1} parent=5 // pred_check
        _
      $region38: #{tpu_custom_call.1} parent=5 // pred_check_branch
        %194 = sbr.rel (%p191) target = $region40
      $region39: #{tpu_custom_call.1} parent=5 // pred_region
        %s195 = ssub.s32 %s14, 1
        %p196 = scmp.lt.s32.totalorder %s19, 1
        %s197 = scalar_select %p196, %s19, 1
        %s198 = smul.addr %s197, 4
        %s199 = smul.addr %s198, 2
        %s200 = scalar_lea.vmem %s0, %s199
        %p201 = pneg %p40
        %p202 = pneg %p37
        %p203 = pneg %p61
        %p204 = pneg %p58
        %p205 = pneg %p82
        %p206 = pneg %p79
        %p207 = pneg %p103
        %p208 = pneg %p100
        %p209 = pneg %p124
        %p210 = pneg %p121
        %p211 = pneg %p150
        %p212 = pneg %p147
        %s213 = sand.u32 %s137, 1
        %s214 = scalar_lea.sflag [#allocation4], %s213
        %s215 = sand.u32 %s137, 1
        %s216 = smul.addr %s215, 48
        %s217 = scalar_lea.vmem [#allocation3], %s216
        %p218 = scmp.lt.s32.totalorder %s19, 1
        %s219 = scalar_select %p218, %s19, 1
        %s220 = smul.addr %s219, 4
        %s221 = smul.addr %s220, 2
        %s222 = scalar_lea.vmem %s0, %s221
        %v224 = vld [vmem:[%s222] sm:$0x3f]
        %v225 = vunpack.c.l.bf16 %v224
        %v226 = vunpack.c.h.bf16 %v224
        %v228 = vcombine.high %v225, %v225
        %230 = vst [vmem:[#allocation2] sm:$0x7] %v225
        %231 = vst [vmem:[#allocation2 + $0x8] sm:$0x7] %v228
        %232 = vst [vmem:[#allocation2 + $0x10] sm:$0x7] %v226
        %v233 = vld [vmem:[%s222] sm:$0xff]
        %v234 = vunpack.c.l.bf16 %v233
        %v235 = vunpack.c.h.bf16 %v233
        %v238 = vcombine.high %v234, %v234
        %v239 = vcombine.high %v235, %v235
        %v240 = vrot.slane %v234, 5
        %v241 = vrot.slane %v238, 5
        %v242 = vrot.slane %v235, 5
        %v243 = vrot.slane %v239, 5
        %244 = vrot.lane.b32.xlu0 %v240, 127
        %v245 = vpop.permute.xlu0 %244
        %246 = vrot.lane.b32.xlu0 %v241, 127
        %v247 = vpop.permute.xlu0 %246
        %248 = vrot.lane.b32.xlu0 %v242, 127
        %v249 = vpop.permute.xlu0 %248
        %250 = vrot.lane.b32.xlu0 %v243, 127
        %v251 = vpop.permute.xlu0 %250
        %vm252 = vcmask 1039360
        %v253 = vsel %vm252, %v245, %v247
        %v254 = vsel %vm252, %v247, %v249
        %v255 = vsel %vm252, %v249, %v251
        %259 = vst [vmem:[#allocation2] sm:$0x38] %v253
        %260 = vst [vmem:[#allocation2 + $0x8] sm:$0x38] %v254
        %261 = vst [vmem:[#allocation2 + $0x10] sm:$0x38] %v255
        %v262 = vld [vmem:[%s222] sm:$0xff]
        %v263 = vunpack.c.l.bf16 %v262
        %v264 = vunpack.c.h.bf16 %v262
        %v267 = vcombine.high %v263, %v263
        %v268 = vcombine.high %v264, %v264
        %v269 = vrot.slane %v263, 2
        %v270 = vrot.slane %v267, 2
        %v271 = vrot.slane %v264, 2
        %v272 = vrot.slane %v268, 2
        %273 = vrot.lane.b32.xlu0 %v269, 126
        %v274 = vpop.permute.xlu0 %273
        %275 = vrot.lane.b32.xlu0 %v270, 126
        %v276 = vpop.permute.xlu0 %275
        %277 = vrot.lane.b32.xlu0 %v271, 126
        %v278 = vpop.permute.xlu0 %277
        %279 = vrot.lane.b32.xlu0 %v272, 126
        %v280 = vpop.permute.xlu0 %279
        %vm281 = vcmask 1031168
        %v282 = vsel %vm281, %v274, %v276
        %v283 = vsel %vm281, %v276, %v278
        %v284 = vsel %vm281, %v278, %v280
        %288 = vst [vmem:[#allocation2] sm:$0xc0] %v282
        %289 = vst [vmem:[#allocation2 + $0x8] sm:$0xc0] %v283
        %290 = vst [vmem:[#allocation2 + $0x10] sm:$0xc0] %v284
        %291 = vst [vmem:[#allocation2 + $0x18] sm:$0x1] %v282
        %292 = vst [vmem:[#allocation2 + $0x20] sm:$0x1] %v283
        %293 = vst [vmem:[#allocation2 + $0x28] sm:$0x1] %v284
        %v294 = vld [vmem:[%s222] sm:$0xff]
        %v295 = vunpack.c.l.bf16 %v294
        %v296 = vunpack.c.h.bf16 %v294
        %v299 = vcombine.high %v295, %v295
        %v300 = vcombine.high %v296, %v296
        %v301 = vrot.slane %v295, 7
        %v302 = vrot.slane %v299, 7
        %v303 = vrot.slane %v296, 7
        %v304 = vrot.slane %v300, 7
        %305 = vrot.lane.b32.xlu0 %v301, 110
        %v306 = vpop.permute.xlu0 %305
        %307 = vrot.lane.b32.xlu0 %v302, 110
        %v308 = vpop.permute.xlu0 %307
        %309 = vrot.lane.b32.xlu0 %v303, 110
        %v310 = vpop.permute.xlu0 %309
        %311 = vrot.lane.b32.xlu0 %v304, 110
        %v312 = vpop.permute.xlu0 %311
        %vm313 = vcmask 900096
        %v314 = vsel %vm313, %v306, %v308
        %v315 = vsel %vm313, %v308, %v310
        %v316 = vsel %vm313, %v310, %v312
        %320 = vst [vmem:[#allocation2 + $0x18] sm:$0xe] %v314
        %321 = vst [vmem:[#allocation2 + $0x20] sm:$0xe] %v315
        %322 = vst [vmem:[#allocation2 + $0x28] sm:$0xe] %v316
        %v323 = vld [vmem:[%s222] sm:$0xff]
        %v324 = vunpack.c.l.bf16 %v323
        %v325 = vunpack.c.h.bf16 %v323
        %v328 = vcombine.low %v324, %v324
        %v329 = vcombine.low %v325, %v325
        %330 = vrot.lane.b32.xlu0 %v328, 109
        %v331 = vpop.permute.xlu0 %330
        %332 = vrot.lane.b32.xlu0 %v324, 109
        %v333 = vpop.permute.xlu0 %332
        %334 = vrot.lane.b32.xlu0 %v329, 109
        %v335 = vpop.permute.xlu0 %334
        %336 = vrot.lane.b32.xlu0 %v325, 109
        %v337 = vpop.permute.xlu0 %336
        %vm338 = vcmask 891904
        %v339 = vsel %vm338, %v331, %v333
        %v340 = vsel %vm338, %v333, %v335
        %v341 = vsel %vm338, %v335, %v337
        %345 = vst [vmem:[#allocation2 + $0x18] sm:$0x70] %v339
        %346 = vst [vmem:[#allocation2 + $0x20] sm:$0x70] %v340
        %347 = vst [vmem:[#allocation2 + $0x28] sm:$0x70] %v341
        %v348 = vld [vmem:[%s222] sm:$0xff]
        %v349 = vunpack.c.l.bf16 %v348
        %v350 = vunpack.c.h.bf16 %v348
        %v353 = vcombine.high %v349, %v349
        %v354 = vcombine.high %v350, %v350
        %v355 = vrot.slane %v349, 1
        %v356 = vrot.slane %v353, 1
        %v357 = vrot.slane %v350, 1
        %v358 = vrot.slane %v354, 1
        %359 = vrot.lane.b32.xlu0 %v355, 108
        %v360 = vpop.permute.xlu0 %359
        %361 = vrot.lane.b32.xlu0 %v356, 108
        %v362 = vpop.permute.xlu0 %361
        %363 = vrot.lane.b32.xlu0 %v357, 108
        %v364 = vpop.permute.xlu0 %363
        %365 = vrot.lane.b32.xlu0 %v358, 108
        %v366 = vpop.permute.xlu0 %365
        %vm367 = vcmask 883712
        %v368 = vsel %vm367, %v360, %v362
        %v369 = vsel %vm367, %v362, %v364
        %v370 = vsel %vm367, %v364, %v366
        %374 = vst [vmem:[#allocation2 + $0x18] sm:$0x80] %v368
        %375 = vst [vmem:[#allocation2 + $0x20] sm:$0x80] %v369
        %376 = vst [vmem:[#allocation2 + $0x28] sm:$0x80] %v370
        %377 = vst [vmem:[#allocation2 + $0x30] sm:$0x3] %v368
        %378 = vst [vmem:[#allocation2 + $0x38] sm:$0x3] %v369
        %379 = vst [vmem:[#allocation2 + $0x40] sm:$0x3] %v370
        %v380 = vld [vmem:[%s222] sm:$0xff]
        %v381 = vunpack.c.l.bf16 %v380
        %v382 = vunpack.c.h.bf16 %v380
        %v385 = vcombine.high %v381, %v381
        %v386 = vcombine.high %v382, %v382
        %v387 = vrot.slane %v381, 6
        %v388 = vrot.slane %v385, 6
        %v389 = vrot.slane %v382, 6
        %v390 = vrot.slane %v386, 6
        %391 = vrot.lane.b32.xlu0 %v387, 92
        %v392 = vpop.permute.xlu0 %391
        %393 = vrot.lane.b32.xlu0 %v388, 92
        %v394 = vpop.permute.xlu0 %393
        %395 = vrot.lane.b32.xlu0 %v389, 92
        %v396 = vpop.permute.xlu0 %395
        %397 = vrot.lane.b32.xlu0 %v390, 92
        %v398 = vpop.permute.xlu0 %397
        %vm399 = vcmask 752640
        %v400 = vsel %vm399, %v392, %v394
        %v401 = vsel %vm399, %v394, %v396
        %v402 = vsel %vm399, %v396, %v398
        %406 = vst [vmem:[#allocation2 + $0x30] sm:$0x1c] %v400
        %407 = vst [vmem:[#allocation2 + $0x38] sm:$0x1c] %v401
        %408 = vst [vmem:[#allocation2 + $0x40] sm:$0x1c] %v402
        %v409 = vld [vmem:[%s222] sm:$0xff]
        %v410 = vunpack.c.l.bf16 %v409
        %v411 = vunpack.c.h.bf16 %v409
        %v414 = vcombine.high %v410, %v410
        %v415 = vcombine.high %v411, %v411
        %v416 = vrot.slane %v410, 3
        %v417 = vrot.slane %v414, 3
        %v418 = vrot.slane %v411, 3
        %v419 = vrot.slane %v415, 3
        %420 = vrot.lane.b32.xlu0 %v416, 91
        %v421 = vpop.permute.xlu0 %420
        %422 = vrot.lane.b32.xlu0 %v417, 91
        %v423 = vpop.permute.xlu0 %422
        %424 = vrot.lane.b32.xlu0 %v418, 91
        %v425 = vpop.permute.xlu0 %424
        %426 = vrot.lane.b32.xlu0 %v419, 91
        %v427 = vpop.permute.xlu0 %426
        %vm428 = vcmask 744448
        %v429 = vsel %vm428, %v421, %v423
        %v430 = vsel %vm428, %v423, %v425
        %v431 = vsel %vm428, %v425, %v427
        %435 = vst [vmem:[#allocation2 + $0x30] sm:$0xe0] %v429
        %436 = vst [vmem:[#allocation2 + $0x38] sm:$0xe0] %v430
        %437 = vst [vmem:[#allocation2 + $0x40] sm:$0xe0] %v431
        %v438 = vld [vmem:[%s222] sm:$0xff]
        %v439 = vunpack.c.l.bf16 %v438
        %v440 = vunpack.c.h.bf16 %v438
        %v443 = vcombine.high %v439, %v439
        %v444 = vcombine.high %v440, %v440
        %445 = vrot.lane.b32.xlu0 %v439, 90
        %v446 = vpop.permute.xlu0 %445
        %447 = vrot.lane.b32.xlu0 %v443, 90
        %v448 = vpop.permute.xlu0 %447
        %449 = vrot.lane.b32.xlu0 %v440, 90
        %v450 = vpop.permute.xlu0 %449
        %451 = vrot.lane.b32.xlu0 %v444, 90
        %v452 = vpop.permute.xlu0 %451
        %vm453 = vcmask 736256
        %v454 = vsel %vm453, %v446, %v448
        %v455 = vsel %vm453, %v448, %v450
        %v456 = vsel %vm453, %v450, %v452
        %460 = vst [vmem:[#allocation2 + $0x48] sm:$0x7] %v454
        %461 = vst [vmem:[#allocation2 + $0x50] sm:$0x7] %v455
        %462 = vst [vmem:[#allocation2 + $0x58] sm:$0x7] %v456
        %v463 = vld [vmem:[#allocation2] sm:$0xff]
        %v464 = vld [vmem:[#allocation2 + $0x8] sm:$0xff]
        %v465 = vld [vmem:[#allocation2 + $0x10] sm:$0xff]
        %v466 = vld [vmem:[#allocation2 + $0x18] sm:$0xff]
        %v467 = vld [vmem:[#allocation2 + $0x20] sm:$0xff]
        %v468 = vld [vmem:[#allocation2 + $0x28] sm:$0xff]
        %v469 = vld [vmem:[#allocation2 + $0x30] sm:$0xff]
        %v470 = vld [vmem:[#allocation2 + $0x38] sm:$0xff]
        %v471 = vld [vmem:[#allocation2 + $0x40] sm:$0xff]
        %v472 = vld [vmem:[#allocation2 + $0x48] sm:$0x7]
        %v473 = vld [vmem:[#allocation2 + $0x50] sm:$0x7]
        %v474 = vld [vmem:[#allocation2 + $0x58] sm:$0x7]
        %v475 = vpack.c.bf16 %v466, %v463
        %v476 = vpack.c.bf16 %v467, %v464
        %v477 = vpack.c.bf16 %v468, %v465
        %v478 = vpack.c.bf16 %v472, %v469
        %v479 = vpack.c.bf16 %v473, %v470
        %v480 = vpack.c.bf16 %v474, %v471
        %v481 = vld [vmem:[%s1] sm:$0xf]
        %v482 = vld [vmem:[%s1 + $0x4] sm:$0xf]
        %v483 = vld [vmem:[%s1 + $0x8] sm:$0xf]
        %v484 = vld [vmem:[%s1 + $0xc] sm:$0xf]
        %v485 = vld [vmem:[%s2] sm:$0xff]
        %v486 = vld [vmem:[%s2 + $0x8] sm:$0xff]
        %v487 = vld [vmem:[%s2 + $0x10] sm:$0xff]
        %v488 = vld [vmem:[%s2 + $0x18] sm:$0xff]
        %490 = vset.pattern.permute.xlu0 0
        %491 = vperm.xlu0 %490, %v485
        %v492 = vpop.permute.xlu0 %491
        %495 = vset.pattern.permute.xlu0 0
        %496 = vperm.xlu0 %495, %v486
        %v497 = vpop.permute.xlu0 %496
        %500 = vset.pattern.permute.xlu0 0
        %501 = vperm.xlu0 %500, %v487
        %v502 = vpop.permute.xlu0 %501
        %505 = vset.pattern.permute.xlu0 0
        %506 = vperm.xlu0 %505, %v488
        %v507 = vpop.permute.xlu0 %506
        %v513 = vunpack.c.l.b16 %v481
        %v514 = vunpack.c.l.b16 %v482
        %v515 = vunpack.c.l.b16 %v483
        %v516 = vunpack.c.l.b16 %v484
        %v517 = vpack.c.b16 %v514, %v513
        %v518 = vpack.c.b16 %v516, %v515
        %vm519 = vcmask 220160
        %v521 = vsel %vm519, %v517, 0
        %v524 = vsel %vm519, %v518, 0
        %vm526 = vcmask 1044480
        %vm527 = vcmask 1045504
        %v528 = vsel %vm526, 4294967295, 65535
        %v529 = vsel %vm527, %v528, 0
        %v531 = vand.u32 %v478, %v529
        %v534 = vand.u32 %v479, %v529
        %v537 = vand.u32 %v480, %v529
        %539 = vmatprep.subr.bf16.mxu0 %v476
        %540 = vmatpush1.bf16.msra.mxu0 %v475
        %541 = vmatprep.subr.bf16.mxu0 %v534
        %542 = vmatpush1.bf16.msra.mxu0 %v531
        %543 = vmatprep.subr.bf16.mxu0 0
        %544 = vmatpush1.bf16.msra.mxu0 0
        %545 = vmatprep.subr.bf16.mxu0 0
        %546 = vmatpush1.bf16.msra.mxu0 0
        %547 = vmatprep.subr.bf16.mxu0 0
        %548 = vmatpush1.bf16.msra.mxu0 0
        %549 = vmatprep.subr.bf16.mxu0 0
        %550 = vmatpush1.bf16.msra.mxu0 0
        %551 = vmatprep.subr.bf16.mxu0 0
        %552 = vmatpush1.bf16.msra.mxu0 0
        %553 = vmatprep.subr.bf16.mxu0 0
        %554 = vmatpush1.bf16.msra.mxu0 0
        %555 = vmatprep.subr.bf16.mxu0 0
        %556 = vmatpush1.bf16.msra.mxu0 0
        %557 = vmatprep.subr.bf16.mxu0 0
        %558 = vmatpush1.bf16.msra.mxu0 0
        %559 = vmatprep.subr.bf16.mxu0 0
        %560 = vmatpush1.bf16.msra.mxu0 0
        %561 = vmatprep.subr.bf16.mxu0 0
        %562 = vmatpush1.bf16.msra.mxu0 0
        %563 = vmatprep.subr.bf16.mxu0 0
        %564 = vmatpush1.bf16.msra.mxu0 0
        %565 = vmatprep.subr.bf16.mxu0 0
        %566 = vmatpush1.bf16.msra.mxu0 0
        %567 = vmatprep.subr.bf16.mxu0 0
        %568 = vmatpush1.bf16.msra.mxu0 0
        %569 = vmatprep.subr.bf16.mxu0 0
        %570 = vmatpush1.bf16.msra.mxu0 0
        %571 = vmatprep.mubr.bf16.mxu0 0
        %572 = vmatmul.mubr.bf16.gmra.mrb[0].mxu0 %v521
        %v573 = vpop.f32.mrb[0].mxu0
        %v574 = vadd.f32 %v492, %v573
        %v575 = vpop.f32.mrb[0].mxu0
        %v576 = vadd.f32 %v492, %v575
        %v577 = vpop.f32.mrb[0].mxu0
        %v578 = vadd.f32 %v497, %v577
        %v579 = vpop.f32.mrb[0].mxu0
        %v580 = vadd.f32 %v497, %v579
        %581 = vmatprep.mubr.bf16.mxu0 0
        %582 = vmatmul.mubr.bf16.gmra.mrb[0].mxu0 %v524
        %v583 = vpop.f32.mrb[0].mxu0
        %v584 = vadd.f32 %v502, %v583
        %v585 = vpop.f32.mrb[0].mxu0
        %v586 = vadd.f32 %v502, %v585
        %v587 = vpop.f32.mrb[0].mxu0
        %v588 = vadd.f32 %v507, %v587
        %v589 = vpop.f32.mrb[0].mxu0
        %v590 = vadd.f32 %v507, %v589
        %591 = vdwg.mxu0
        %592 = vmatprep.subr.bf16.mxu0 0
        %593 = vmatpush1.bf16.msra.mxu0 %v477
        %594 = vmatprep.subr.bf16.mxu0 0
        %595 = vmatpush1.bf16.msra.mxu0 %v537
        %596 = vmatprep.subr.bf16.mxu0 0
        %597 = vmatpush1.bf16.msra.mxu0 0
        %598 = vmatprep.subr.bf16.mxu0 0
        %599 = vmatpush1.bf16.msra.mxu0 0
        %600 = vmatprep.subr.bf16.mxu0 0
        %601 = vmatpush1.bf16.msra.mxu0 0
        %602 = vmatprep.subr.bf16.mxu0 0
        %603 = vmatpush1.bf16.msra.mxu0 0
        %604 = vmatprep.subr.bf16.mxu0 0
        %605 = vmatpush1.bf16.msra.mxu0 0
        %606 = vmatprep.subr.bf16.mxu0 0
        %607 = vmatpush1.bf16.msra.mxu0 0
        %608 = vmatprep.subr.bf16.mxu0 0
        %609 = vmatpush1.bf16.msra.mxu0 0
        %610 = vmatprep.subr.bf16.mxu0 0
        %611 = vmatpush1.bf16.msra.mxu0 0
        %612 = vmatprep.subr.bf16.mxu0 0
        %613 = vmatpush1.bf16.msra.mxu0 0
        %614 = vmatprep.subr.bf16.mxu0 0
        %615 = vmatpush1.bf16.msra.mxu0 0
        %616 = vmatprep.subr.bf16.mxu0 0
        %617 = vmatpush1.bf16.msra.mxu0 0
        %618 = vmatprep.subr.bf16.mxu0 0
        %619 = vmatpush1.bf16.msra.mxu0 0
        %620 = vmatprep.subr.bf16.mxu0 0
        %621 = vmatpush1.bf16.msra.mxu0 0
        %622 = vmatprep.subr.bf16.mxu0 0
        %623 = vmatpush1.bf16.msra.mxu0 0
        %624 = vmatprep.mubr.bf16.mxu0 0
        %625 = vmatmul.mubr.bf16.gmra.mrb[0].mxu0 %v521
        %v626 = vpop.f32.mrb[0].mxu0
        %v627 = vadd.f32 %v492, %v626
        %v628 = vpop.f32.mrb[0].mxu0
        %v629 = vpop.f32.mrb[0].mxu0
        %v630 = vadd.f32 %v497, %v629
        %v631 = vpop.f32.mrb[0].mxu0
        %632 = vmatprep.mubr.bf16.mxu0 0
        %633 = vmatmul.mubr.bf16.gmra.mrb[0].mxu0 %v524
        %v634 = vpop.f32.mrb[0].mxu0
        %v635 = vadd.f32 %v502, %v634
        %v636 = vpop.f32.mrb[0].mxu0
        %v637 = vpop.f32.mrb[0].mxu0
        %v638 = vadd.f32 %v507, %v637
        %v639 = vpop.f32.mrb[0].mxu0
        %640 = vdwg.mxu0
        %v641 = vmax.f32 %v574, 0.0
        %v642 = vmax.f32 %v576, 0.0
        %v643 = vmax.f32 %v627, 0.0
        %v644 = vmax.f32 %v578, 0.0
        %v645 = vmax.f32 %v580, 0.0
        %v646 = vmax.f32 %v630, 0.0
        %v647 = vmax.f32 %v584, 0.0
        %v648 = vmax.f32 %v586, 0.0
        %v649 = vmax.f32 %v635, 0.0
        %v650 = vmax.f32 %v588, 0.0
        %v651 = vmax.f32 %v590, 0.0
        %v652 = vmax.f32 %v638, 0.0
        %v653 = vld [vmem:[%s3] sm:$0xff]
        %v654 = vld [vmem:[%s3 + $0x8] sm:$0xff]
        %v655 = vld [vmem:[%s4] sm:$0xff]
        %v656 = vld [vmem:[%s4 + $0x8] sm:$0xff]
        %658 = vset.pattern.permute.xlu0 0
        %659 = vperm.xlu0 %658, %v655
        %v660 = vpop.permute.xlu0 %659
        %663 = vset.pattern.permute.xlu0 0
        %664 = vperm.xlu0 %663, %v656
        %v665 = vpop.permute.xlu0 %664
        %vm667 = vcmask 261120
        %v669 = vsel %vm667, %v653, 0
        %v672 = vsel %vm667, %v654, 0
        %674 = vmatprep.subr.mxu0 %v642
        %675 = vmatpush1.msra.mxu0 %v641
        %676 = vmatprep.subr.mxu0 %v645
        %677 = vmatpush1.msra.mxu0 %v644
        %678 = vmatprep.subr.mxu0 %v648
        %679 = vmatpush1.msra.mxu0 %v647
        %680 = vmatprep.subr.mxu0 %v651
        %681 = vmatpush1.msra.mxu0 %v650
        %682 = vmatprep.subr.mxu0 0.0
        %683 = vmatpush1.msra.mxu0 0.0
        %684 = vmatprep.subr.mxu0 0.0
        %685 = vmatpush1.msra.mxu0 0.0
        %686 = vmatprep.subr.mxu0 0.0
        %687 = vmatpush1.msra.mxu0 0.0
        %688 = vmatprep.subr.mxu0 0.0
        %689 = vmatpush1.msra.mxu0 0.0
        %690 = vmatprep.subr.mxu0 0.0
        %691 = vmatpush1.msra.mxu0 0.0
        %692 = vmatprep.subr.mxu0 0.0
        %693 = vmatpush1.msra.mxu0 0.0
        %694 = vmatprep.subr.mxu0 0.0
        %695 = vmatpush1.msra.mxu0 0.0
        %696 = vmatprep.subr.mxu0 0.0
        %697 = vmatpush1.msra.mxu0 0.0
        %698 = vmatprep.subr.mxu0 0.0
        %699 = vmatpush1.msra.mxu0 0.0
        %700 = vmatprep.subr.mxu0 0.0
        %701 = vmatpush1.msra.mxu0 0.0
        %702 = vmatprep.subr.mxu0 0.0
        %703 = vmatpush1.msra.mxu0 0.0
        %704 = vmatprep.subr.mxu0 0.0
        %705 = vmatpush1.msra.mxu0 0.0
        %706 = vmatprep.subr.mxu0 0.0
        %707 = vmatpush1.msra.mxu0 0.0
        %708 = vmatprep.subr.mxu0 0.0
        %709 = vmatpush1.msra.mxu0 0.0
        %710 = vmatprep.subr.mxu0 0.0
        %711 = vmatpush1.msra.mxu0 0.0
        %712 = vmatprep.subr.mxu0 0.0
        %713 = vmatpush1.msra.mxu0 0.0
        %714 = vmatprep.subr.mxu0 0.0
        %715 = vmatpush1.msra.mxu0 0.0
        %716 = vmatprep.subr.mxu0 0.0
        %717 = vmatpush1.msra.mxu0 0.0
        %718 = vmatprep.subr.mxu0 0.0
        %719 = vmatpush1.msra.mxu0 0.0
        %720 = vmatprep.subr.mxu0 0.0
        %721 = vmatpush1.msra.mxu0 0.0
        %722 = vmatprep.subr.mxu0 0.0
        %723 = vmatpush1.msra.mxu0 0.0
        %724 = vmatprep.subr.mxu0 0.0
        %725 = vmatpush1.msra.mxu0 0.0
        %726 = vmatprep.subr.mxu0 0.0
        %727 = vmatpush1.msra.mxu0 0.0
        %728 = vmatprep.subr.mxu0 0.0
        %729 = vmatpush1.msra.mxu0 0.0
        %730 = vmatprep.subr.mxu0 0.0
        %731 = vmatpush1.msra.mxu0 0.0
        %732 = vmatprep.subr.mxu0 0.0
        %733 = vmatpush1.msra.mxu0 0.0
        %734 = vmatprep.subr.mxu0 0.0
        %735 = vmatpush1.msra.mxu0 0.0
        %736 = vmatprep.subr.mxu0 0.0
        %737 = vmatpush1.msra.mxu0 0.0
        %738 = vmatprep.mubr.f32.mxu0 0.0
        %739 = vmatmul.mubr.f32.gmra.mrb[0].mxu0 %v669
        %v740 = vpop.f32.mrb[0].mxu0
        %v741 = vadd.f32 %v660, %v740
        %v742 = vpop.f32.mrb[0].mxu0
        %v743 = vadd.f32 %v660, %v742
        %744 = vmatprep.mubr.f32.mxu0 0.0
        %745 = vmatmul.mubr.f32.gmra.mrb[0].mxu0 %v672
        %v746 = vpop.f32.mrb[0].mxu0
        %v747 = vadd.f32 %v665, %v746
        %v748 = vpop.f32.mrb[0].mxu0
        %v749 = vadd.f32 %v665, %v748
        %750 = vdwg.mxu0
        %751 = vmatprep.subr.mxu0 0.0
        %752 = vmatpush1.msra.mxu0 %v643
        %753 = vmatprep.subr.mxu0 0.0
        %754 = vmatpush1.msra.mxu0 %v646
        %755 = vmatprep.subr.mxu0 0.0
        %756 = vmatpush1.msra.mxu0 %v649
        %757 = vmatprep.subr.mxu0 0.0
        %758 = vmatpush1.msra.mxu0 %v652
        %759 = vmatprep.subr.mxu0 0.0
        %760 = vmatpush1.msra.mxu0 0.0
        %761 = vmatprep.subr.mxu0 0.0
        %762 = vmatpush1.msra.mxu0 0.0
        %763 = vmatprep.subr.mxu0 0.0
        %764 = vmatpush1.msra.mxu0 0.0
        %765 = vmatprep.subr.mxu0 0.0
        %766 = vmatpush1.msra.mxu0 0.0
        %767 = vmatprep.subr.mxu0 0.0
        %768 = vmatpush1.msra.mxu0 0.0
        %769 = vmatprep.subr.mxu0 0.0
        %770 = vmatpush1.msra.mxu0 0.0
        %771 = vmatprep.subr.mxu0 0.0
        %772 = vmatpush1.msra.mxu0 0.0
        %773 = vmatprep.subr.mxu0 0.0
        %774 = vmatpush1.msra.mxu0 0.0
        %775 = vmatprep.subr.mxu0 0.0
        %776 = vmatpush1.msra.mxu0 0.0
        %777 = vmatprep.subr.mxu0 0.0
        %778 = vmatpush1.msra.mxu0 0.0
        %779 = vmatprep.subr.mxu0 0.0
        %780 = vmatpush1.msra.mxu0 0.0
        %781 = vmatprep.subr.mxu0 0.0
        %782 = vmatpush1.msra.mxu0 0.0
        %783 = vmatprep.subr.mxu0 0.0
        %784 = vmatpush1.msra.mxu0 0.0
        %785 = vmatprep.subr.mxu0 0.0
        %786 = vmatpush1.msra.mxu0 0.0
        %787 = vmatprep.subr.mxu0 0.0
        %788 = vmatpush1.msra.mxu0 0.0
        %789 = vmatprep.subr.mxu0 0.0
        %790 = vmatpush1.msra.mxu0 0.0
        %791 = vmatprep.subr.mxu0 0.0
        %792 = vmatpush1.msra.mxu0 0.0
        %793 = vmatprep.subr.mxu0 0.0
        %794 = vmatpush1.msra.mxu0 0.0
        %795 = vmatprep.subr.mxu0 0.0
        %796 = vmatpush1.msra.mxu0 0.0
        %797 = vmatprep.subr.mxu0 0.0
        %798 = vmatpush1.msra.mxu0 0.0
        %799 = vmatprep.subr.mxu0 0.0
        %800 = vmatpush1.msra.mxu0 0.0
        %801 = vmatprep.subr.mxu0 0.0
        %802 = vmatpush1.msra.mxu0 0.0
        %803 = vmatprep.subr.mxu0 0.0
        %804 = vmatpush1.msra.mxu0 0.0
        %805 = vmatprep.subr.mxu0 0.0
        %806 = vmatpush1.msra.mxu0 0.0
        %807 = vmatprep.subr.mxu0 0.0
        %808 = vmatpush1.msra.mxu0 0.0
        %809 = vmatprep.subr.mxu0 0.0
        %810 = vmatpush1.msra.mxu0 0.0
        %811 = vmatprep.subr.mxu0 0.0
        %812 = vmatpush1.msra.mxu0 0.0
        %813 = vmatprep.subr.mxu0 0.0
        %814 = vmatpush1.msra.mxu0 0.0
        %815 = vmatprep.mubr.f32.mxu0 0.0
        %816 = vmatmul.mubr.f32.gmra.mrb[0].mxu0 %v669
        %v817 = vpop.f32.mrb[0].mxu0
        %v818 = vadd.f32 %v660, %v817
        %v819 = vpop.f32.mrb[0].mxu0
        %820 = vmatprep.mubr.f32.mxu0 0.0
        %821 = vmatmul.mubr.f32.gmra.mrb[0].mxu0 %v672
        %v822 = vpop.f32.mrb[0].mxu0
        %v823 = vadd.f32 %v665, %v822
        %v824 = vpop.f32.mrb[0].mxu0
        %825 = vdwg.mxu0
        %826 = vst [vmem:[%s217] sm:$0xff] %v741
        %827 = vst [vmem:[%s217 + $0x8] sm:$0xff] %v743
        %828 = vst [vmem:[%s217 + $0x10] sm:$0xff] %v818
        %829 = vst [vmem:[%s217 + $0x18] sm:$0xff] %v747
        %830 = vst [vmem:[%s217 + $0x20] sm:$0xff] %v749
        %831 = vst [vmem:[%s217 + $0x28] sm:$0xff] %v823
        %s832 = sand.u32 %s137, 1
        %s833 = scalar_lea.sflag [#allocation4], %s832
        %s834 = sand.u32 %s137, 1
        %s835 = smul.addr %s834, 48
        %s836 = scalar_lea.vmem [#allocation3], %s835
        // Predicated region
        $region41: #{tpu_custom_call.1} parent=39 // pred_check
          %p837 = pneg %p147
        $region42: #{tpu_custom_call.1} parent=39 // pred_check_branch
          %839 = sbr.rel (%p837) target = $region44
        $region43: #{tpu_custom_call.1} parent=39 // pred_region
          %s841 = ssub.s32 768, 768
          %842 = vsyncadd %s833, %s841
          %s843 = smul.addr %s19, 6
          %s844 = smul.addr %s843, 128
          %s845 = scalar_lea.hbm %s5, %s844
          %s846 = sshll.u32 %s836, 4
          %s847 = int_to_ptr.vmem [resolvable:$true] %s846
          %852 = dma.vmem_to_hbm [thread:$0]  %s847, 768, %s845, %s833, 384, 384, 24
        $region44: #{tpu_custom_call.1} parent=39 // pred_fallthru
          _
      $region40: #{tpu_custom_call.1} parent=5 // pred_fallthru
        _
      %p853 = scmp.le.s32.totalorder 2, %s14
      // Predicated region
      $region45: #{tpu_custom_call.1} parent=5 // pred_check
        %p854 = pneg %p853
      $region46: #{tpu_custom_call.1} parent=5 // pred_check_branch
        %856 = sbr.rel (%p854) target = $region48
      $region47: #{tpu_custom_call.1} parent=5 // pred_region
        %s857 = ssub.s32 %s14, 2
        // Predicated region
        $region49: #{tpu_custom_call.1} parent=47 // pred_check
          %p858 = pneg %p153
        $region50: #{tpu_custom_call.1} parent=47 // pred_check_branch
          %860 = sbr.rel (%p858) target = $region52
        $region51: #{tpu_custom_call.1} parent=47 // pred_region
          %s861 = sand.u32 %s138, 1
          %s862 = scalar_lea.sflag [#allocation4], %s861
          %s863 = sand.u32 %s138, 1
          %s864 = smul.addr %s863, 48
          %s865 = scalar_lea.vmem [#allocation3], %s864
          %866 = dma.done %s862, 768
        $region52: #{tpu_custom_call.1} parent=47 // pred_fallthru
          _
      $region48: #{tpu_custom_call.1} parent=5 // pred_fallthru
        _
    $region6: #{tpu_custom_call.1} parent=1 // loop_footer
      %s18 = sadd.s32 1, %s14
    $region7: #{tpu_custom_call.1} parent=1 // loop_footer_branch
      %13 = sbr.rel target = $region3
    $region8: #{tpu_custom_call.1} parent=1 // loop_exit
      _
    %867 = vsyncpa [#allocation4], 1
    %s868 = scalar_lea.sflag [#allocation4], 1
    %869 = vsyncpa %s868, 1

</llo_original>
